<compile_context>
chip_gen: v7x
topology: tpu7x:2x2x1
jax: 0.10.0
libtpu: 0.0.40
codegen_flags: <defaults>
</compile_context>

<pallas_src>
import functools
import math

import jax
import jax.numpy as jnp
import numpy as np
from jax.experimental import pallas as pl
from jax.experimental.pallas import tpu as pltpu


def _round_up(v, m):
    return ((v + m - 1) // m) * m


# ----------------------------------------------------------------------------
# pltpu.roll direction probe (np.roll convention expected).  Kept as a tiny
# one-time device probe for robustness across JAX versions; it is lru-cached
# and run once before jit so it never sits on the steady-state path.
# TODO(synk): could be resolved at package/test time and baked as a constant.
# ----------------------------------------------------------------------------
@functools.lru_cache(maxsize=None)
def _roll_is_numpy_style() -> bool:
    def _k(x_ref, o_ref):
        o_ref[...] = pltpu.roll(x_ref[...], 1, axis=1)

    x = jnp.asarray(np.tile(np.arange(128, dtype=np.float32), (8, 1)))
    out = pl.pallas_call(
        _k, out_shape=jax.ShapeDtypeStruct((8, 128), jnp.float32))(x)
    # np.roll(row, 1) puts row[0] (== 0) at index 1.
    return bool(np.asarray(out)[0, 1] == 0.0)


# ----------------------------------------------------------------------------
# Fused StriderBlockv2 kernel.  One grid step processes `lanes` spatial
# positions (lanes = N*H*W when the batch is folded, H*W otherwise).
# ----------------------------------------------------------------------------
def _strider_kernel(x_ref, m_ref, w_ref, b_ref, o_ref, *,
                    W, lanes, Cin_p, Cb, Csub_p, Cout, Cout_p,
                    dil_order, order_cfg, roll_np_style):
    f32 = jnp.float32
    nb = len(order_cfg)
    n_dil = len(dil_order)
    Kc = 9 * Cb                      # im2col K per dilation group
    R2 = nb * Csub_p                 # stacked conv2 output rows
    RR = nb * Cb                     # stacked resize output rows
    r_wr = R2                        # static row offsets into the weight pack
    r_w1 = R2 + RR
    r_wf = r_w1 + Cb

    x = x_ref[...]                                           # (Cin_p, lanes)

    # conv1 1x1 + bn1 + relu (scale folded; bias rides the ones-row of x).
    w1 = w_ref[r_w1:r_w1 + Cb, 0:Cin_p]
    h = jnp.maximum(jnp.dot(w1, x, preferred_element_type=f32), 0.0)

    def shift(v, delta):
        # out[:, p] = v[:, (p + delta) % lanes]; wrapped lanes are zeroed by
        # the caller's masks.  Lane rotation lives on the XLU slot.
        if delta % lanes == 0:
            return v
        s = (-delta) % lanes if roll_np_style else delta % lanes
        return pltpu.roll(v, s, axis=1)

    # ---- all 3x3 branches: ONE im2col matmul per dilation group (K = 9*Cb).
    c2_parts = []
    row_off = 0
    for g, dil in enumerate(dil_order):
        n_in_g = sum(1 for _s, d in order_cfg if d == dil)
        taps = []
        for ky in range(3):
            for kx in range(3):
                dy, dx = (ky - 1) * dil, (kx - 1) * dil
                delta = dy * W + dx
                t = shift(h, delta)
                if delta != 0:
                    t = t * m_ref[9 * g + 3 * ky + kx]       # zero out-of-image
                taps.append(t)
        slab = jnp.concatenate(taps, axis=0)                 # (9*Cb, lanes)
        rows = n_in_g * Csub_p
        w2g = w_ref[row_off:row_off + rows, 0:Kc]
        c2_parts.append(jnp.dot(w2g, slab, preferred_element_type=f32))
        row_off += rows
    c2 = c2_parts[0] if n_dil == 1 else jnp.concatenate(c2_parts, axis=0)
    c2 = jnp.maximum(c2 + b_ref[0:R2, :], 0.0)               # bn2 + relu

    # ---- stride-2 branches: stride-2 conv + nearest-2x upsample == keep the
    # even-(y,x) samples of the stride-1 result and replicate them onto the
    # odd neighbours (bn2/relu are elementwise, so they commute with it).
    has_s2 = any(s == 2 for s, _d in order_cfg)
    if has_s2:
        x_odd = m_ref[9 * n_dil]
        y_odd = m_ref[9 * n_dil + 1]
        parts = []
        for k, (stride, _d) in enumerate(order_cfg):
            bk = c2[k * Csub_p:(k + 1) * Csub_p]
            if stride == 2:
                bk = bk + x_odd * (shift(bk, -1) - bk)
                bk = bk + y_odd * (shift(bk, -W) - bk)
            parts.append(bk)
        c2 = parts[0] if nb == 1 else jnp.concatenate(parts, axis=0)

    # ---- all per-branch 1x1 "resize" convs as ONE block-diagonal matmul
    # (bnr scale and 1/num_branches folded), per-branch bias + relu, then sum.
    wr = w_ref[r_wr:r_wr + RR, 0:R2]
    r = jnp.maximum(jnp.dot(wr, c2, preferred_element_type=f32)
                    + b_ref[R2:R2 + RR, :], 0.0)             # (RR, lanes)
    acc = r[0:Cb]
    for k in range(1, nb):
        acc = acc + r[k * Cb:(k + 1) * Cb]

    # ---- conv3 + bn3 and downsample(identity) + norm in ONE matmul; both
    # biases ride the ones-row of x.
    wf = w_ref[r_wf:r_wf + Cout_p, 0:Cb + Cin_p]
    out = jnp.dot(wf, jnp.concatenate([acc, x], axis=0),
                  preferred_element_type=f32)                # (Cout_p, lanes)
    o_ref[...] = out[:Cout].astype(o_ref.dtype)


# ----------------------------------------------------------------------------
# Host-side helpers: masks (tiled per image) and packed, BN-folded parameters.
# ----------------------------------------------------------------------------
def _build_masks(H, W, n_images, dil_order, has_stride2):
    HW = H * W
    yy, xx = np.meshgrid(np.arange(H), np.arange(W), indexing="ij")
    yy = np.tile(yy.reshape(1, HW), (1, n_images))
    xx = np.tile(xx.reshape(1, HW), (1, n_images))
    masks = []
    for dil in dil_order:
        for ky in range(3):
            for kx in range(3):
                dy, dx = (ky - 1) * dil, (kx - 1) * dil
                valid = ((yy + dy >= 0) & (yy + dy < H) &
                         (xx + dx >= 0) & (xx + dx < W))
                masks.append(valid.astype(np.float32))
    if has_stride2:
        masks.append((xx % 2 == 1).astype(np.float32))
        masks.append((yy % 2 == 1).astype(np.float32))
    return jnp.asarray(np.stack(masks, axis=0))              # (M, 1, n*HW)


def _fold_params(p, order, Cin, Cin_p, Cb, Csub, Csub_p, Cout, Cout_p):
    f32 = jnp.float32
    nb = len(order)
    R2 = nb * Csub_p
    RR = nb * Cb
    Kc = 9 * Cb
    Wcols = max(Kc, R2, Cin_p, Cb + Cin_p)

    # conv1: bn1 scale folded into the weight, bias on the ones-row column.
    w1 = jnp.zeros((Cb, Cin_p), f32)
    w1 = w1.at[:, :Cin].set(p["w1"] * p["s1"][:, None])
    w1 = w1.at[:, Cin].set(p["b1"])

    # conv2 im2col weights (branch rows in dilation-group-major `order`).
    w2_rows, b2_rows = [], []
    for i in order:
        w = jnp.transpose(p["w2"][i], (0, 2, 3, 1))          # (Csub,3,3,Cb)
        w = w * p["s2"][i][:, None, None, None]
        w = w.reshape(Csub, Kc)
        w2_rows.append(jnp.pad(w, ((0, Csub_p - Csub), (0, 0))))
        b2_rows.append(jnp.pad(p["b2"][i], (0, Csub_p - Csub)))
    w2 = jnp.concatenate(w2_rows, axis=0)                    # (R2, Kc)
    b2 = jnp.concatenate(b2_rows)[:, None]                   # (R2, 1)

    # block-diagonal resize weights (bnr scale and 1/num_branches folded).
    wr = jnp.zeros((RR, R2), f32)
    br_rows = []
    for k, i in enumerate(order):
        blk = (p["wr"][i] * p["sr"][i][:, None]) / nb        # (Cb, Csub)
        wr = wr.at[k * Cb:(k + 1) * Cb,
                   k * Csub_p:k * Csub_p + Csub].set(blk)
        br_rows.append(p["br"][i] / nb)
    br = jnp.concatenate(br_rows)[:, None]                   # (RR, 1)

    # conv3+bn3 and downsample+norm fused; summed biases on the ones-row.
    wf = jnp.zeros((Cout_p, Cb + Cin_p), f32)
    wf = wf.at[:Cout, :Cb].set(p["w3"] * p["s3"][:, None])
    wf = wf.at[:Cout, Cb:Cb + Cin].set(p["wds"] * p["sds"][:, None])
    wf = wf.at[:Cout, Cb + Cin].set(p["b3"] + p["bds"])

    def padc(a):
        return jnp.pad(a, ((0, 0), (0, Wcols - a.shape[1])))

    wpack = jnp.concatenate([padc(w2), padc(wr), padc(w1), padc(wf)], axis=0)
    bpack = jnp.concatenate([b2, br], axis=0)                # (R2+RR, 1)
    return wpack, bpack


# ----------------------------------------------------------------------------
# Public forward: NCHW in / NCHW out, one fused pallas_call.
# fold_batch=True  -> single grid step, batch folded into lanes (best on the
#                     single-TensorCore v5e/v6e).
# fold_batch=False -> grid=(N,) "parallel" so v7x's two TensorCores split it.
# ----------------------------------------------------------------------------
def strider_block_v2_forward(x_nchw, params, branch_config, output_index,
                             *, fold_batch=True):
    N, Cin, H, W = x_nchw.shape
    nb = len(branch_config)

    cfg = []
    for transposed, stride, dil in branch_config:
        # TODO(synk): ConvTranspose2d branches (transposed=True) not implemented;
        # the chosen branch_config uses regular convolutions only.
        assert not transposed
        assert stride[0] == stride[1] and dil[0] == dil[1]
        assert stride[0] in (1, 2)
        cfg.append((int(stride[0]), int(dil[0])))
    cfg = tuple(cfg)

    # The fused kernel assumes the selected output branch keeps the input
    # resolution, so every FeatureResize is either identity or an exact
    # nearest-2x upsample of a stride-2 branch (handled in-kernel).
    assert cfg[output_index][0] == 1
    if any(s == 2 for s, _ in cfg):
        assert H % 2 == 0 and W % 2 == 0
    # TODO(synk): adaptive_fusion / full_residual / avg-pool FeatureResize paths
    # of the reference module are not exercised by this configuration.

    dil_order = tuple(dict.fromkeys(d for _s, d in cfg))
    # Branches regrouped dilation-major so each group's rows are contiguous in
    # the packed weights; the final branch sum is order-invariant.
    order = tuple(i for d in dil_order for i in range(nb) if cfg[i][1] == d)
    order_cfg = tuple(cfg[i] for i in order)
    has_s2 = any(s == 2 for s, _ in cfg)

    Cb = params["w1"].shape[0]
    Cout = params["w3"].shape[0]
    Csub = params["w2"].shape[1]
    assert Cb % 8 == 0, "bottleneck_channels must be a multiple of 8"
    Csub_p = _round_up(Csub, 8)
    Cin_p = _round_up(Cin + 1, 8)        # +1 ones-row carries the folded biases
    Cout_p = _round_up(Cout, 8)
    HW = H * W

    n_steps = 1 if fold_batch else N
    assert (N * HW) % n_steps == 0
    lanes = (N * HW) // n_steps
    assert lanes % 128 == 0, "per-step lane extent must be a multiple of 128"

    masks = _build_masks(H, W, lanes // HW, dil_order, has_s2)
    wpack, bpack = _fold_params(params, order, Cin, Cin_p, Cb, Csub, Csub_p,
                                Cout, Cout_p)

    # Input layout: (Cin_p, N*HW), lane = n*HW + y*W + x; ones-row at index Cin.
    x2 = jnp.transpose(x_nchw.astype(jnp.float32), (1, 0, 2, 3))
    x2 = x2.reshape(Cin, N * HW)
    rows = [x2, jnp.ones((1, N * HW), jnp.float32)]
    if Cin_p - Cin - 1 > 0:
        rows.append(jnp.zeros((Cin_p - Cin - 1, N * HW), jnp.float32))
    x_aug = jnp.concatenate(rows, axis=0)

    kernel = functools.partial(
        _strider_kernel, W=W, lanes=lanes, Cin_p=Cin_p, Cb=Cb, Csub_p=Csub_p,
        Cout=Cout, Cout_p=Cout_p, dil_order=dil_order, order_cfg=order_cfg,
        roll_np_style=_roll_is_numpy_style())

    def full_spec(a):
        return pl.BlockSpec(a.shape, lambda n, _nd=a.ndim: (0,) * _nd)

    out = pl.pallas_call(
        kernel,
        out_shape=jax.ShapeDtypeStruct((Cout, N * HW), jnp.float32),
        grid=(n_steps,),
        in_specs=[pl.BlockSpec((Cin_p, lanes), lambda n: (0, n)),
                  full_spec(masks), full_spec(wpack), full_spec(bpack)],
        out_specs=pl.BlockSpec((Cout, lanes), lambda n: (0, n)),
        compiler_params=pltpu.CompilerParams(
            dimension_semantics=("parallel",)),
    )(x_aug, masks, wpack, bpack)

    return out.reshape(Cout, N, H, W).transpose(1, 0, 2, 3)


# ----------------------------------------------------------------------------
# Pure-JAX reference (NCHW, lax.conv) for the in-script correctness check.
# ----------------------------------------------------------------------------
def _feature_resize_ref(x, target):
    H, W = x.shape[-2:]
    th, tw = target
    if (H, W) == (th, tw):
        return x
    if H < th or W < tw:   # nearest upsample, exact integer factor
        return jnp.repeat(jnp.repeat(x, th // H, axis=2), tw // W, axis=3)
    ry, rx = H // th, W // tw
    N, C = x.shape[:2]
    return x.reshape(N, C, th, ry, tw, rx).mean(axis=(3, 5))


def strider_block_v2_reference(x, p, branch_config, output_index):
    nb = len(branch_config)
    hi = jax.lax.Precision.HIGHEST

    def conv1x1(v, w):   # w: (O, I)
        return jnp.einsum("oi,nihw->nohw", w, v, precision=hi)

    def affine(v, s, b):
        return v * s[None, :, None, None] + b[None, :, None, None]

    identity = x
    h = jnp.maximum(affine(conv1x1(x, p["w1"]), p["s1"], p["b1"]), 0.0)

    branches = []
    for i, (_t, stride, dil) in enumerate(branch_config):
        y = jax.lax.conv_general_dilated(
            h, p["w2"][i], window_strides=tuple(stride),
            padding=tuple((d, d) for d in dil), rhs_dilation=tuple(dil),
            dimension_numbers=("NCHW", "OIHW", "NCHW"), precision=hi)
        branches.append(jnp.maximum(affine(y, p["s2"][i], p["b2"][i]), 0.0))

    target = branches[output_index].shape[-2:]
    acc = 0.0
    for i in range(nb):
        b = _feature_resize_ref(branches[i], target)
        b = conv1x1(b, p["wr"][i])
        acc = acc + jnp.maximum(affine(b, p["sr"][i], p["br"][i]), 0.0)
    acc = acc / nb

    out = affine(conv1x1(acc, p["w3"]), p["s3"], p["b3"])
    idn = affine(conv1x1(identity, p["wds"]), p["sds"], p["bds"])
    idn = _feature_resize_ref(idn, target)
    return out + idn


# ----------------------------------------------------------------------------
if __name__ == "__main__":
    N, Cin, H, W = 2, 4, 16, 16
    Cb, Cout = 8, 8                                  # bottleneck / out channels
    branch_config = [
        (False, (1, 1), (1, 1)),   # standard 3x3
        (False, (2, 2), (1, 1)),   # stride-2 3x3 (nearest 2x upsample on resize)
        (False, (1, 1), (2, 2)),   # dilated 3x3
    ]
    nb = len(branch_config)
    Csub = math.ceil(Cb / nb)                        # = 3
    output_index = 0

    key = jax.random.PRNGKey(0)
    keys = iter(jax.random.split(key, 32))

    def init(shape, scale=0.1):
        return scale * jax.random.normal(next(keys), shape, jnp.float32)

    params = {
        "w1": init((Cb, Cin)), "s1": 1.0 + init((Cb,)), "b1": init((Cb,)),
        "w2": init((nb, Csub, Cb, 3, 3)),
        "s2": 1.0 + init((nb, Csub)), "b2": init((nb, Csub)),
        "wr": init((nb, Cb, Csub)),
        "sr": 1.0 + init((nb, Cb)), "br": init((nb, Cb)),
        "w3": init((Cout, Cb)), "s3": 1.0 + init((Cout,)), "b3": init((Cout,)),
        "wds": init((Cout, Cin)), "sds": 1.0 + init((Cout,)), "bds": init((Cout,)),
    }
    x = jax.random.normal(next(keys), (N, Cin, H, W), jnp.float32)

    _ = _roll_is_numpy_style()   # run the tiny probe once, outside jit tracing

    ref = jax.block_until_ready(
        strider_block_v2_reference(x, params, branch_config, output_index))

    # Batch folded into lanes (single grid step): best for v5e/v6e.
    fwd_fold = jax.jit(functools.partial(
        strider_block_v2_forward, branch_config=branch_config,
        output_index=output_index, fold_batch=True))
    out = jax.block_until_ready(fwd_fold(x, params))
    assert out.shape == (N, Cout, H, W), out.shape
    assert bool(jnp.all(jnp.isfinite(out)))
    err = float(jnp.max(jnp.abs(out - ref)))
    assert bool(jnp.allclose(out, ref, atol=2e-3, rtol=2e-3)), err

    # 2-way "parallel" batch grid (v7x: both TensorCores busy) — same kernel.
    fwd_grid = jax.jit(functools.partial(
        strider_block_v2_forward, branch_config=branch_config,
        output_index=output_index, fold_batch=False))
    out2 = jax.block_until_ready(fwd_grid(x, params))
    err2 = float(jnp.max(jnp.abs(out2 - ref)))
    assert bool(jnp.allclose(out2, ref, atol=2e-3, rtol=2e-3)), err2

    print("KERNEL_OK")
</pallas_src>

<mosaic_0001>
module attributes {stable_mosaic.version = 11 : i64} {
  func.func @_k(%arg0: memref<8x128xf32, #tpu.memory_space<vmem>>, %arg1: memref<8x128xf32, #tpu.memory_space<vmem>>) attributes {dimension_semantics = [], scalar_prefetch = 0 : i64, scratch_operands = 0 : i64, tpu.core_type = #tpu.core_type<tc>} {
    %c0 = arith.constant 0 : index
    %c0_0 = arith.constant 0 : index
    %0 = vector.load %arg0[%c0, %c0_0] : memref<8x128xf32, #tpu.memory_space<vmem>>, vector<8x128xf32>
    %c1_i32 = arith.constant 1 : i32
    %1 = tpu.dynamic_rotate %0 by %c1_i32 dim 1 : vector<8x128xf32>, i32 -> vector<8x128xf32>
    %c0_1 = arith.constant 0 : index
    %c0_2 = arith.constant 0 : index
    %2 = vector.load %arg1[%c0_1, %c0_2] : memref<8x128xf32, #tpu.memory_space<vmem>>, vector<8x128xf32>
    tpu.vector_store %arg1[%c0_1, %c0_2], %1 {strides = array<i32>} : memref<8x128xf32, #tpu.memory_space<vmem>>, vector<8x128xf32>,
    return
  }
}

</mosaic_0001>

<llo_original>
// kernel: tpu_custom_call.1
$region0: #{tpu_custom_call.1}
  #allocation0 [shape = 'u32[]', space=smem, size = 0x4, offset = 0x4, fixed_abs, tag = 'smem constant byte address 0x4 - core index']
  #allocation1 [shape = 'u32[144,128]{1,0:T(1,128)}', space=vmem, size = 0x12000, scoped, tag = 'internal scratch']
  %s0 = inlined_call_operand.hbm [shape: f32[8,128], index: 0, kind: input, shape index: {}]
  %s1 = inlined_call_operand.hbm [shape: f32[8,128], index: 1, kind: output, shape index: {}]
  %s2 = sld [smem:[#allocation0]]
  $region18: #{tpu_custom_call.1} parent=0
    _
  %s4 = ssub.s32 1, %s2
  %s5 = scalar_select 0, %s4, %s2
  $region1: #{tpu_custom_call.1} parent=0
    #allocation2 [shape = 'u8[4096]{0}', space=vmem, size = 0x1000, scoped, tag = 'input window, operand 0, single buffered']
    #allocation3 [shape = 's32[1]{0}', space=sflag, size = 0x4, scoped, tag = 'scoped memory for tpu_custom_call.1']
    #allocation4 [shape = 's32[1]{0}', space=sflag, size = 0x4, scoped, tag = 'scoped memory for tpu_custom_call.1']
    #allocation5 [shape = 'u8[4096]{0}', space=vmem, size = 0x1000, scoped, tag = 'output window, operand 0, single buffered']
    %6 = vsyncpa [#allocation3], 0
    %7 = vsyncpa [#allocation4], 0
    // Predicated region
    $region2: #{tpu_custom_call.1} parent=1 // pred_check
      _
    $region3: #{tpu_custom_call.1} parent=1 // pred_check_branch
      %9 = sbr.rel (0) target = $region5
    $region4: #{tpu_custom_call.1} parent=1 // pred_region
      %s11 = ssub.s32 128, 128
      %12 = vsyncadd [#allocation3], %s11
      %s14 = sshll.u32 [#allocation2], 4
      %s15 = int_to_ptr.vmem [resolvable:$true] %s14
      %17 = dma.hbm_to_vmem [thread:$0]  %s0, 128, %s15, [#allocation3]
    $region5: #{tpu_custom_call.1} parent=1 // pred_fallthru
      _
    // Predicated region
    $region6: #{tpu_custom_call.1} parent=1 // pred_check
      _
    $region7: #{tpu_custom_call.1} parent=1 // pred_check_branch
      %19 = sbr.rel (0) target = $region9
    $region8: #{tpu_custom_call.1} parent=1 // pred_region
      %20 = dma.done [#allocation3], 128
    $region9: #{tpu_custom_call.1} parent=1 // pred_fallthru
      _
    %v21 = vld [vmem:[#allocation2] sm:$0xff]
    %22 = vrot.lane.b32.xlu0 %v21, 1
    %v23 = vpop.permute.xlu0 %22
    %24 = vst [vmem:[#allocation5] sm:$0xff] %v23
    // Predicated region
    $region10: #{tpu_custom_call.1} parent=1 // pred_check
      _
    $region11: #{tpu_custom_call.1} parent=1 // pred_check_branch
      %26 = sbr.rel (0) target = $region13
    $region12: #{tpu_custom_call.1} parent=1 // pred_region
      %s28 = ssub.s32 128, 128
      %29 = vsyncadd [#allocation4], %s28
      %s31 = sshll.u32 [#allocation5], 4
      %s32 = int_to_ptr.vmem [resolvable:$true] %s31
      %34 = dma.vmem_to_hbm [thread:$0]  %s32, 128, %s1, [#allocation4]
    $region13: #{tpu_custom_call.1} parent=1 // pred_fallthru
      _
    // Predicated region
    $region14: #{tpu_custom_call.1} parent=1 // pred_check
      _
    $region15: #{tpu_custom_call.1} parent=1 // pred_check_branch
      %36 = sbr.rel (0) target = $region17
    $region16: #{tpu_custom_call.1} parent=1 // pred_region
      %37 = dma.done [#allocation4], 128
    $region17: #{tpu_custom_call.1} parent=1 // pred_fallthru
      _
    %38 = vsyncpa [#allocation3], 1
    %39 = vsyncpa [#allocation4], 1

</llo_original>
